<compile_context>
chip_gen: v7x
topology: tpu7x:2x2x1
jax: 0.10.0
libtpu: 0.0.40
codegen_flags: <defaults>
</compile_context>

<pallas_src>
import jax
import jax.numpy as jnp
from jax import lax
from jax.experimental import pallas as pl
from jax.experimental.pallas import tpu as pltpu

_LANE = 128          # lane width (last-dim alignment for the MXU/DMA)
_SUBLANE = 16        # second-minor alignment for bf16-packed tiles (ok for f32 too)


# --------------------------------------------------------------------------- #
# Kernel: one NT matmul tile. h is (tm, Dp), ent is (tn, Dp); contraction on
# the last axes so the entity tile is consumed in its native (N, D) layout
# (no in-kernel transpose / XLU work). bf16 operands, f32 accumulate.
# --------------------------------------------------------------------------- #
def _distmult_matmul_kernel(h_ref, ent_ref, out_ref):
    out_ref[...] = lax.dot_general(
        h_ref[...], ent_ref[...],
        dimension_numbers=(((1,), (1,)), ((), ())),
        preferred_element_type=jnp.float32,
    ).astype(out_ref.dtype)


# --------------------------------------------------------------------------- #
# Helpers
# --------------------------------------------------------------------------- #
def _round_up(x, m):
    return ((x + m - 1) // m) * m


def _vmem_budget_bytes():
    """Per-generation VMEM budget with headroom for compiler scratch.

    ~48 MiB on v7x (64 MiB physical per TC), ~96 MiB on v5e/v6e (128 MiB).
    Falls back to the v7x-safe number if the hardware query is unavailable.
    """
    try:
        cap = pltpu.get_tpu_info().vmem_capacity_bytes
    except Exception:
        cap = 64 * 1024 * 1024
    return min(int(cap) * 3 // 4, 112 * 1024 * 1024)


def _select_tiles(B, N, Dp, h_bytes, ent_bytes, out_bytes, budget):
    """Pick (tm, tn) so the double-buffered tiles fit the VMEM budget.

    VMEM cost ~= 2*tm*Dp*h_bytes + 2*tn*Dp*ent_bytes + 2*tm*tn*out_bytes.
    Prefer a single row tile (tm == padded B) so the entity table streams
    once; grow tn up to 4096 to amortize per-grid-step overhead.
    """
    tn_cap = min(4096, _round_up(N, _LANE))
    tm = _round_up(min(B, 512), _SUBLANE)
    while True:
        fixed = 2 * tm * Dp * h_bytes
        per_tn = 2 * Dp * ent_bytes + 2 * tm * out_bytes
        avail = budget - fixed
        tn = 0
        if avail > 0:
            tn = min(tn_cap, (avail // per_tn) // _LANE * _LANE)
        if tn >= min(tn_cap, 512) or tm <= _SUBLANE:
            break
        tm = _round_up(max(tm // 2, _SUBLANE), _SUBLANE)
    tn = max(tn, _LANE)
    return tm, tn


def prepare_entity_table(all_ent_emb, dtype=jnp.bfloat16):
    """One-time model-state prep: cast the entity table to the streaming dtype
    and zero-pad the contraction dim D to a multiple of 128. Do this OUTSIDE
    the per-step forward so the large (N, D) array is never re-padded/copied
    per call."""
    _, D = all_ent_emb.shape
    Dp = _round_up(D, _LANE)
    ent = all_ent_emb.astype(dtype)
    if Dp != D:
        ent = jnp.pad(ent, ((0, 0), (0, Dp - D)))
    return ent


# --------------------------------------------------------------------------- #
# Forward
# --------------------------------------------------------------------------- #
def distmult_forward(e1_emb, rel_emb, all_ent_emb, inverse_rel_emb=None, *,
                     tm=None, tn=None, vmem_limit_bytes=None):
    """DistMult scores against all entities.

    `all_ent_emb` should ideally be pre-processed once with
    prepare_entity_table() (D padded to a lane multiple, bf16); a raw table is
    accepted and prepared on the fly as a compatibility path.
    """
    B, D = e1_emb.shape
    N, Dp_ent = all_ent_emb.shape
    out_dtype = e1_emb.dtype

    if Dp_ent % _LANE != 0:
        # Compatibility path only — prefer prepare_entity_table() once outside.
        all_ent_emb = prepare_entity_table(all_ent_emb, dtype=all_ent_emb.dtype)
        N, Dp_ent = all_ent_emb.shape
    assert Dp_ent >= D and Dp_ent % _LANE == 0, "entity table D must cover e1 D"
    op_dtype = all_ent_emb.dtype

    # TODO(synk): Dropout(args.input_drop) -> eval-mode identity.
    # Combine relations + elementwise product on the tiny (B, D) operand here:
    # a single row input drops 1-2 double-buffered (tm, Dp) tiles from VMEM
    # (decisive within v7x's 64 MiB budget) and lets tn grow everywhere.
    rel = rel_emb if inverse_rel_emb is None else (rel_emb + inverse_rel_emb) * 0.5
    h = (e1_emb * rel).astype(op_dtype)

    # ---- tile selection (VMEM-fit) ----------------------------------------
    budget = _vmem_budget_bytes() if vmem_limit_bytes is None else vmem_limit_bytes
    auto_tm, auto_tn = _select_tiles(
        B, N, Dp_ent,
        jnp.dtype(op_dtype).itemsize, jnp.dtype(op_dtype).itemsize,
        jnp.dtype(out_dtype).itemsize, budget)
    tm = auto_tm if tm is None else _round_up(tm, _SUBLANE)
    tn = auto_tn if tn is None else _round_up(tn, _LANE)

    # ---- pad only the tiny row operand (zero-pad D: contraction safety) ----
    n_row_tiles = pl.cdiv(B, tm)
    Mp = n_row_tiles * tm
    if (Mp, Dp_ent) != (B, D):
        h = jnp.pad(h, ((0, Mp - B), (0, Dp_ent - D)))

    # Entity axis is the SLOW / leading parallel axis: the table streams from
    # HBM exactly once total (row tiles cycle on the fast axis and are cheap
    # to re-read); on v7x the leading parallel axis is split across the 2 TCs.
    grid = (pl.cdiv(N, tn), n_row_tiles)
    h_spec = pl.BlockSpec((tm, Dp_ent), lambda j, i: (i, 0))
    ent_spec = pl.BlockSpec((tn, Dp_ent), lambda j, i: (j, 0))
    out_spec = pl.BlockSpec((tm, tn), lambda j, i: (i, j))

    # Output is (B, N) directly: ragged last tiles are masked on store, so no
    # per-call entity padding and no pred[:B, :N] slice copy.
    return pl.pallas_call(
        _distmult_matmul_kernel,
        out_shape=jax.ShapeDtypeStruct((B, N), out_dtype),
        grid=grid,
        in_specs=[h_spec, ent_spec],
        out_specs=out_spec,
        compiler_params=pltpu.CompilerParams(
            dimension_semantics=("parallel", "parallel"),
            vmem_limit_bytes=budget),
    )(h, all_ent_emb)


# --------------------------------------------------------------------------- #
# Demo / correctness check
# --------------------------------------------------------------------------- #
if __name__ == "__main__":
    # Small, non-tile-aligned shapes: batch B=6, embedding dim D=200, N=300.
    B, D, N = 6, 200, 300
    key = jax.random.PRNGKey(0)
    k1, k2, k3, k4 = jax.random.split(key, 4)

    e1_emb = jax.random.normal(k1, (B, D), dtype=jnp.float32)
    rel_emb = jax.random.normal(k2, (B, D), dtype=jnp.float32)
    inv_rel_emb = jax.random.normal(k3, (B, D), dtype=jnp.float32)
    all_ent_emb = jax.random.normal(k4, (N, D), dtype=jnp.float32)

    # One-time model-state prep: pad D to a lane multiple + cast to bf16.
    ent_prepared = prepare_entity_table(all_ent_emb, dtype=jnp.bfloat16)

    def ref(e1, rel, ent, inv=None):
        # Same bf16 operand rounding / f32 accumulate as the kernel path.
        r = rel if inv is None else (rel + inv) * 0.5
        hh = (e1 * r).astype(jnp.bfloat16)
        return jnp.dot(hh, ent.astype(jnp.bfloat16).T,
                       preferred_element_type=jnp.float32).astype(e1.dtype)

    # Path 1: no inverse relation embedding.
    pred = jax.block_until_ready(distmult_forward(e1_emb, rel_emb, ent_prepared))
    assert pred.shape == (B, N)
    assert jnp.allclose(pred, ref(e1_emb, rel_emb, all_ent_emb),
                        atol=1e-2, rtol=1e-2)

    # Path 2: with inverse relation embedding.
    pred_inv = jax.block_until_ready(
        distmult_forward(e1_emb, rel_emb, ent_prepared, inv_rel_emb))
    assert pred_inv.shape == (B, N)
    assert jnp.allclose(pred_inv,
                        ref(e1_emb, rel_emb, all_ent_emb, inv_rel_emb),
                        atol=1e-2, rtol=1e-2)

    print("KERNEL_OK")
</pallas_src>

<mosaic_0001>
module attributes {stable_mosaic.version = 11 : i64} {
  func.func @_distmult_matmul_kernel(%arg0: i32, %arg1: i32, %arg2: memref<16x256xbf16, #tpu.memory_space<vmem>>, %arg3: memref<384x256xbf16, #tpu.memory_space<vmem>>, %arg4: memref<16x384xf32, #tpu.memory_space<vmem>>) attributes {dimension_semantics = [#tpu.dimension_semantics<parallel>, #tpu.dimension_semantics<parallel>], iteration_bounds = array<i64: 1, 1>, scalar_prefetch = 0 : i64, scratch_operands = 0 : i64, tpu.core_type = #tpu.core_type<tc>, window_params = [{transform_indices = @transform_0, window_bounds = array<i64: 16, 256>}, {transform_indices = @transform_1, window_bounds = array<i64: 384, 256>}, {transform_indices = @transform_2, window_bounds = array<i64: 16, 384>}]} {
    %c0 = arith.constant 0 : index
    %c0_0 = arith.constant 0 : index
    %0 = vector.load %arg2[%c0, %c0_0] : memref<16x256xbf16, #tpu.memory_space<vmem>>, vector<16x256xbf16>
    %c0_1 = arith.constant 0 : index
    %c0_2 = arith.constant 0 : index
    %1 = vector.load %arg3[%c0_1, %c0_2] : memref<384x256xbf16, #tpu.memory_space<vmem>>, vector<384x256xbf16>
    %cst = arith.constant dense<0.000000e+00> : vector<16x384xf32>
    %2 = tpu.matmul %0, %1, %cst {dimension_numbers = #tpu.dot_dimension_numbers<[1], [1], [0], [0], [0, 0, 1, 0], [], []>} : vector<16x256xbf16>, vector<384x256xbf16>, vector<16x384xf32> -> vector<16x384xf32>
    %c0_3 = arith.constant 0 : index
    %c0_4 = arith.constant 0 : index
    %3 = vector.load %arg4[%c0_3, %c0_4] : memref<16x384xf32, #tpu.memory_space<vmem>>, vector<16x384xf32>
    tpu.vector_store %arg4[%c0_3, %c0_4], %2 {strides = array<i32>} : memref<16x384xf32, #tpu.memory_space<vmem>>, vector<16x384xf32>,
    return
  }
  func.func @transform_0(%arg0: i32, %arg1: i32) -> (i32, i32) {
    %c0_i32 = arith.constant 0 : i32
    %c0_i32_0 = arith.constant 0 : i32
    return %arg1, %c0_i32 : i32, i32
  }
  func.func @transform_1(%arg0: i32, %arg1: i32) -> (i32, i32) {
    %c0_i32 = arith.constant 0 : i32
    %c0_i32_0 = arith.constant 0 : i32
    return %arg0, %c0_i32 : i32, i32
  }
  func.func @transform_2(%arg0: i32, %arg1: i32) -> (i32, i32) {
    %c0_i32 = arith.constant 0 : i32
    return %arg1, %arg0 : i32, i32
  }
}

</mosaic_0001>

<llo_original>
// kernel: tpu_custom_call.1
$region0: #{tpu_custom_call.1}
  #allocation0 [shape = 'u32[]', space=smem, size = 0x4, offset = 0x4, fixed_abs, tag = 'smem constant byte address 0x4 - core index']
  #allocation1 [shape = 'u32[144,128]{1,0:T(1,128)}', space=vmem, size = 0x12000, scoped, tag = 'internal scratch']
  %s0 = inlined_call_operand.hbm [shape: bf16[16,256], index: 0, kind: input, shape index: {}]
  %s1 = inlined_call_operand.hbm [shape: bf16[300,256], index: 1, kind: input, shape index: {}]
  %s2 = inlined_call_operand.hbm [shape: f32[6,300], index: 2, kind: output, shape index: {}]
  %s3 = sld [smem:[#allocation0]]
  $region26: #{tpu_custom_call.1} parent=0
    _
  %s5 = ssub.s32 1, %s3
  %s6 = scalar_select 0, %s5, %s3
  $region1: #{tpu_custom_call.1} parent=0
    #allocation2 [shape = 'u8[8192]{0}', space=vmem, size = 0x2000, scoped, tag = 'input window, operand 0, single buffered']
    #allocation3 [shape = 's32[1]{0}', space=sflag, size = 0x4, scoped, tag = 'scoped memory for tpu_custom_call.1']
    #allocation4 [shape = 's32[1]{0}', space=sflag, size = 0x4, scoped, tag = 'scoped memory for tpu_custom_call.1']
    #allocation5 [shape = 'u8[196608]{0}', space=vmem, size = 0x30000, scoped, tag = 'input window, operand 1, single buffered']
    #allocation6 [shape = 's32[1]{0}', space=sflag, size = 0x4, scoped, tag = 'scoped memory for tpu_custom_call.1']
    #allocation7 [shape = 'u8[24576]{0}', space=vmem, size = 0x6000, scoped, tag = 'output window, operand 0, single buffered']
    %7 = vsyncpa [#allocation3], 0
    %8 = vsyncpa [#allocation6], 0
    %9 = vsyncpa [#allocation4], 0
    // Predicated region
    $region2: #{tpu_custom_call.1} parent=1 // pred_check
      _
    $region3: #{tpu_custom_call.1} parent=1 // pred_check_branch
      %11 = sbr.rel (0) target = $region5
    $region4: #{tpu_custom_call.1} parent=1 // pred_region
      %s13 = ssub.s32 256, 256
      %14 = vsyncadd [#allocation3], %s13
      %s15 = sshll.u32 [#allocation2], 4
      %s16 = int_to_ptr.vmem [resolvable:$true] %s15
      %21 = dma.hbm_to_vmem [thread:$0]  %s0, 256, %s16, [#allocation3], 128, 128, 8
    $region5: #{tpu_custom_call.1} parent=1 // pred_fallthru
      _
    // Predicated region
    $region6: #{tpu_custom_call.1} parent=1 // pred_check
      _
    $region7: #{tpu_custom_call.1} parent=1 // pred_check_branch
      %23 = sbr.rel (0) target = $region9
    $region8: #{tpu_custom_call.1} parent=1 // pred_region
      %s25 = ssub.s32 6144, 4864
      %26 = vsyncadd [#allocation6], %s25
      %s27 = sshll.u32 [#allocation5], 4
      %s28 = int_to_ptr.vmem [resolvable:$true] %s27
      %33 = dma.hbm_to_vmem [thread:$0]  %s1, 4864, %s28, [#allocation6], 128, 128, 8
    $region9: #{tpu_custom_call.1} parent=1 // pred_fallthru
      _
    // Predicated region
    $region10: #{tpu_custom_call.1} parent=1 // pred_check
      _
    $region11: #{tpu_custom_call.1} parent=1 // pred_check_branch
      %35 = sbr.rel (0) target = $region13
    $region12: #{tpu_custom_call.1} parent=1 // pred_region
      %36 = dma.done [#allocation3], 256
    $region13: #{tpu_custom_call.1} parent=1 // pred_fallthru
      _
    // Predicated region
    $region14: #{tpu_custom_call.1} parent=1 // pred_check
      _
    $region15: #{tpu_custom_call.1} parent=1 // pred_check_branch
      %38 = sbr.rel (0) target = $region17
    $region16: #{tpu_custom_call.1} parent=1 // pred_region
      %39 = dma.done [#allocation6], 6144
    $region17: #{tpu_custom_call.1} parent=1 // pred_fallthru
      _
    %v41 = vld [vmem:[#allocation2] sm:$0xff]
    %v42 = vld [vmem:[#allocation2 + $0x8] sm:$0xff]
    %v43 = vld [vmem:[#allocation5] sm:$0xff]
    %v44 = vld [vmem:[#allocation5 + $0x8] sm:$0xff]
    %v45 = vld [vmem:[#allocation5 + $0x10] sm:$0xff]
    %v46 = vld [vmem:[#allocation5 + $0x18] sm:$0xff]
    %v47 = vld [vmem:[#allocation5 + $0x20] sm:$0xff]
    %v48 = vld [vmem:[#allocation5 + $0x28] sm:$0xff]
    %v49 = vld [vmem:[#allocation5 + $0x30] sm:$0xff]
    %v50 = vld [vmem:[#allocation5 + $0x38] sm:$0xff]
    %v51 = vld [vmem:[#allocation5 + $0x40] sm:$0xff]
    %v52 = vld [vmem:[#allocation5 + $0x48] sm:$0xff]
    %v53 = vld [vmem:[#allocation5 + $0x50] sm:$0xff]
    %v54 = vld [vmem:[#allocation5 + $0x58] sm:$0xff]
    %v55 = vld [vmem:[#allocation5 + $0x60] sm:$0xff]
    %v56 = vld [vmem:[#allocation5 + $0x68] sm:$0xff]
    %v57 = vld [vmem:[#allocation5 + $0x70] sm:$0xff]
    %v58 = vld [vmem:[#allocation5 + $0x78] sm:$0xff]
    %v59 = vld [vmem:[#allocation5 + $0x80] sm:$0xff]
    %v60 = vld [vmem:[#allocation5 + $0x88] sm:$0xff]
    %v61 = vld [vmem:[#allocation5 + $0x90] sm:$0xff]
    %v62 = vld [vmem:[#allocation5 + $0x98] sm:$0xff]
    %v63 = vld [vmem:[#allocation5 + $0xa0] sm:$0xff]
    %v64 = vld [vmem:[#allocation5 + $0xa8] sm:$0xff]
    %v65 = vld [vmem:[#allocation5 + $0xb0] sm:$0xff]
    %v66 = vld [vmem:[#allocation5 + $0xb8] sm:$0xff]
    %v67 = vld [vmem:[#allocation5 + $0xc0] sm:$0xff]
    %v68 = vld [vmem:[#allocation5 + $0xc8] sm:$0xff]
    %v69 = vld [vmem:[#allocation5 + $0xd0] sm:$0xff]
    %v70 = vld [vmem:[#allocation5 + $0xd8] sm:$0xff]
    %v71 = vld [vmem:[#allocation5 + $0xe0] sm:$0xff]
    %v72 = vld [vmem:[#allocation5 + $0xe8] sm:$0xff]
    %v73 = vld [vmem:[#allocation5 + $0xf0] sm:$0xff]
    %v74 = vld [vmem:[#allocation5 + $0xf8] sm:$0xff]
    %v75 = vld [vmem:[#allocation5 + $0x100] sm:$0xff]
    %v76 = vld [vmem:[#allocation5 + $0x108] sm:$0xff]
    %v77 = vld [vmem:[#allocation5 + $0x110] sm:$0xff]
    %v78 = vld [vmem:[#allocation5 + $0x118] sm:$0xff]
    %v79 = vld [vmem:[#allocation5 + $0x120] sm:$0xff]
    %v80 = vld [vmem:[#allocation5 + $0x128] sm:$0xff]
    %v81 = vld [vmem:[#allocation5 + $0x130] sm:$0xff]
    %v82 = vld [vmem:[#allocation5 + $0x138] sm:$0xff]
    %v83 = vld [vmem:[#allocation5 + $0x140] sm:$0xff]
    %v84 = vld [vmem:[#allocation5 + $0x148] sm:$0xff]
    %v85 = vld [vmem:[#allocation5 + $0x150] sm:$0xff]
    %v86 = vld [vmem:[#allocation5 + $0x158] sm:$0xff]
    %v87 = vld [vmem:[#allocation5 + $0x160] sm:$0xff]
    %v88 = vld [vmem:[#allocation5 + $0x168] sm:$0xff]
    %v89 = vld [vmem:[#allocation5 + $0x170] sm:$0xff]
    %v90 = vld [vmem:[#allocation5 + $0x178] sm:$0xff]
    %v93 = vunpack.c.l.b16 %v41
    %v94 = vunpack.c.h.b16 %v41
    %v95 = vunpack.c.l.b16 %v42
    %v96 = vunpack.c.h.b16 %v42
    %v97 = vpack.c.b16 %v95, %v93
    %v98 = vpack.c.b16 %v96, %v94
    %v149 = vunpack.c.l.b16 %v43
    %v150 = vunpack.c.h.b16 %v43
    %v151 = vunpack.c.l.b16 %v44
    %v152 = vunpack.c.h.b16 %v44
    %v153 = vunpack.c.l.b16 %v45
    %v154 = vunpack.c.h.b16 %v45
    %v155 = vunpack.c.l.b16 %v46
    %v156 = vunpack.c.h.b16 %v46
    %v157 = vunpack.c.l.b16 %v47
    %v158 = vunpack.c.h.b16 %v47
    %v159 = vunpack.c.l.b16 %v48
    %v160 = vunpack.c.h.b16 %v48
    %v161 = vunpack.c.l.b16 %v49
    %v162 = vunpack.c.h.b16 %v49
    %v163 = vunpack.c.l.b16 %v50
    %v164 = vunpack.c.h.b16 %v50
    %v165 = vunpack.c.l.b16 %v51
    %v166 = vunpack.c.h.b16 %v51
    %v167 = vunpack.c.l.b16 %v52
    %v168 = vunpack.c.h.b16 %v52
    %v169 = vunpack.c.l.b16 %v53
    %v170 = vunpack.c.h.b16 %v53
    %v171 = vunpack.c.l.b16 %v54
    %v172 = vunpack.c.h.b16 %v54
    %v173 = vunpack.c.l.b16 %v55
    %v174 = vunpack.c.h.b16 %v55
    %v175 = vunpack.c.l.b16 %v56
    %v176 = vunpack.c.h.b16 %v56
    %v177 = vunpack.c.l.b16 %v57
    %v178 = vunpack.c.h.b16 %v57
    %v179 = vunpack.c.l.b16 %v58
    %v180 = vunpack.c.h.b16 %v58
    %v181 = vunpack.c.l.b16 %v59
    %v182 = vunpack.c.h.b16 %v59
    %v183 = vunpack.c.l.b16 %v60
    %v184 = vunpack.c.h.b16 %v60
    %v185 = vunpack.c.l.b16 %v61
    %v186 = vunpack.c.h.b16 %v61
    %v187 = vunpack.c.l.b16 %v62
    %v188 = vunpack.c.h.b16 %v62
    %v189 = vunpack.c.l.b16 %v63
    %v190 = vunpack.c.h.b16 %v63
    %v191 = vunpack.c.l.b16 %v64
    %v192 = vunpack.c.h.b16 %v64
    %v193 = vunpack.c.l.b16 %v65
    %v194 = vunpack.c.h.b16 %v65
    %v195 = vunpack.c.l.b16 %v66
    %v196 = vunpack.c.h.b16 %v66
    %v197 = vunpack.c.l.b16 %v67
    %v198 = vunpack.c.h.b16 %v67
    %v199 = vunpack.c.l.b16 %v68
    %v200 = vunpack.c.h.b16 %v68
    %v201 = vunpack.c.l.b16 %v69
    %v202 = vunpack.c.h.b16 %v69
    %v203 = vunpack.c.l.b16 %v70
    %v204 = vunpack.c.h.b16 %v70
    %v205 = vunpack.c.l.b16 %v71
    %v206 = vunpack.c.h.b16 %v71
    %v207 = vunpack.c.l.b16 %v72
    %v208 = vunpack.c.h.b16 %v72
    %v209 = vunpack.c.l.b16 %v73
    %v210 = vunpack.c.h.b16 %v73
    %v211 = vunpack.c.l.b16 %v74
    %v212 = vunpack.c.h.b16 %v74
    %v213 = vunpack.c.l.b16 %v75
    %v214 = vunpack.c.h.b16 %v75
    %v215 = vunpack.c.l.b16 %v76
    %v216 = vunpack.c.h.b16 %v76
    %v217 = vunpack.c.l.b16 %v77
    %v218 = vunpack.c.h.b16 %v77
    %v219 = vunpack.c.l.b16 %v78
    %v220 = vunpack.c.h.b16 %v78
    %v221 = vunpack.c.l.b16 %v79
    %v222 = vunpack.c.h.b16 %v79
    %v223 = vunpack.c.l.b16 %v80
    %v224 = vunpack.c.h.b16 %v80
    %v225 = vunpack.c.l.b16 %v81
    %v226 = vunpack.c.h.b16 %v81
    %v227 = vunpack.c.l.b16 %v82
    %v228 = vunpack.c.h.b16 %v82
    %v229 = vunpack.c.l.b16 %v83
    %v230 = vunpack.c.h.b16 %v83
    %v231 = vunpack.c.l.b16 %v84
    %v232 = vunpack.c.h.b16 %v84
    %v233 = vunpack.c.l.b16 %v85
    %v234 = vunpack.c.h.b16 %v85
    %v235 = vunpack.c.l.b16 %v86
    %v236 = vunpack.c.h.b16 %v86
    %v237 = vunpack.c.l.b16 %v87
    %v238 = vunpack.c.h.b16 %v87
    %v239 = vunpack.c.l.b16 %v88
    %v240 = vunpack.c.h.b16 %v88
    %v241 = vunpack.c.l.b16 %v89
    %v242 = vunpack.c.h.b16 %v89
    %v243 = vunpack.c.l.b16 %v90
    %v244 = vunpack.c.h.b16 %v90
    %v245 = vpack.c.b16 %v151, %v149
    %v246 = vpack.c.b16 %v152, %v150
    %v247 = vpack.c.b16 %v155, %v153
    %v248 = vpack.c.b16 %v156, %v154
    %v249 = vpack.c.b16 %v159, %v157
    %v250 = vpack.c.b16 %v160, %v158
    %v251 = vpack.c.b16 %v163, %v161
    %v252 = vpack.c.b16 %v164, %v162
    %v253 = vpack.c.b16 %v167, %v165
    %v254 = vpack.c.b16 %v168, %v166
    %v255 = vpack.c.b16 %v171, %v169
    %v256 = vpack.c.b16 %v172, %v170
    %v257 = vpack.c.b16 %v175, %v173
    %v258 = vpack.c.b16 %v176, %v174
    %v259 = vpack.c.b16 %v179, %v177
    %v260 = vpack.c.b16 %v180, %v178
    %v261 = vpack.c.b16 %v183, %v181
    %v262 = vpack.c.b16 %v184, %v182
    %v263 = vpack.c.b16 %v187, %v185
    %v264 = vpack.c.b16 %v188, %v186
    %v265 = vpack.c.b16 %v191, %v189
    %v266 = vpack.c.b16 %v192, %v190
    %v267 = vpack.c.b16 %v195, %v193
    %v268 = vpack.c.b16 %v196, %v194
    %v269 = vpack.c.b16 %v199, %v197
    %v270 = vpack.c.b16 %v200, %v198
    %v271 = vpack.c.b16 %v203, %v201
    %v272 = vpack.c.b16 %v204, %v202
    %v273 = vpack.c.b16 %v207, %v205
    %v274 = vpack.c.b16 %v208, %v206
    %v275 = vpack.c.b16 %v211, %v209
    %v276 = vpack.c.b16 %v212, %v210
    %v277 = vpack.c.b16 %v215, %v213
    %v278 = vpack.c.b16 %v216, %v214
    %v279 = vpack.c.b16 %v219, %v217
    %v280 = vpack.c.b16 %v220, %v218
    %v281 = vpack.c.b16 %v223, %v221
    %v282 = vpack.c.b16 %v224, %v222
    %v283 = vpack.c.b16 %v227, %v225
    %v284 = vpack.c.b16 %v228, %v226
    %v285 = vpack.c.b16 %v231, %v229
    %v286 = vpack.c.b16 %v232, %v230
    %v287 = vpack.c.b16 %v235, %v233
    %v288 = vpack.c.b16 %v236, %v234
    %v289 = vpack.c.b16 %v239, %v237
    %v290 = vpack.c.b16 %v240, %v238
    %v291 = vpack.c.b16 %v243, %v241
    %v292 = vpack.c.b16 %v244, %v242
    %341 = vmatprep.subr.bf16.mxu0 %v246
    %342 = vmatpush1.bf16.xpose.msra.mxu0 %v245
    %343 = vmatprep.subr.bf16.mxu0 %v248
    %344 = vmatpush1.bf16.xpose.msra.mxu0 %v247
    %345 = vmatprep.subr.bf16.mxu0 %v250
    %346 = vmatpush1.bf16.xpose.msra.mxu0 %v249
    %347 = vmatprep.subr.bf16.mxu0 %v252
    %348 = vmatpush1.bf16.xpose.msra.mxu0 %v251
    %349 = vmatprep.subr.bf16.mxu0 %v254
    %350 = vmatpush1.bf16.xpose.msra.mxu0 %v253
    %351 = vmatprep.subr.bf16.mxu0 %v256
    %352 = vmatpush1.bf16.xpose.msra.mxu0 %v255
    %353 = vmatprep.subr.bf16.mxu0 %v258
    %354 = vmatpush1.bf16.xpose.msra.mxu0 %v257
    %355 = vmatprep.subr.bf16.mxu0 %v260
    %356 = vmatpush1.bf16.xpose.msra.mxu0 %v259
    %357 = vmatprep.subr.bf16.mxu0 %v262
    %358 = vmatpush1.bf16.xpose.msra.mxu0 %v261
    %359 = vmatprep.subr.bf16.mxu0 %v264
    %360 = vmatpush1.bf16.xpose.msra.mxu0 %v263
    %361 = vmatprep.subr.bf16.mxu0 %v266
    %362 = vmatpush1.bf16.xpose.msra.mxu0 %v265
    %363 = vmatprep.subr.bf16.mxu0 %v268
    %364 = vmatpush1.bf16.xpose.msra.mxu0 %v267
    %365 = vmatprep.subr.bf16.mxu0 %v270
    %366 = vmatpush1.bf16.xpose.msra.mxu0 %v269
    %367 = vmatprep.subr.bf16.mxu0 %v272
    %368 = vmatpush1.bf16.xpose.msra.mxu0 %v271
    %369 = vmatprep.subr.bf16.mxu0 %v274
    %370 = vmatpush1.bf16.xpose.msra.mxu0 %v273
    %371 = vmatprep.subr.bf16.mxu0 %v276
    %372 = vmatpush1.bf16.xpose.msra.mxu0 %v275
    %373 = vmatprep.mubr.bf16.mxu0 %v98
    %374 = vmatmul.mubr.bf16.gmra.mrb[0].mxu0 %v97
    %v375 = vpop.f32.mrb[0].mxu0
    %v376 = vadd.f32 0.0, %v375
    %v377 = vpop.f32.mrb[0].mxu0
    %v378 = vadd.f32 0.0, %v377
    %v379 = vpop.f32.mrb[0].mxu0
    %v380 = vadd.f32 0.0, %v379
    %v381 = vpop.f32.mrb[0].mxu0
    %v382 = vadd.f32 0.0, %v381
    %383 = vdwg.mxu0
    %384 = vmatprep.subr.bf16.mxu0 %v278
    %385 = vmatpush1.bf16.xpose.msra.mxu0 %v277
    %386 = vmatprep.subr.bf16.mxu0 %v280
    %387 = vmatpush1.bf16.xpose.msra.mxu0 %v279
    %388 = vmatprep.subr.bf16.mxu0 %v282
    %389 = vmatpush1.bf16.xpose.msra.mxu0 %v281
    %390 = vmatprep.subr.bf16.mxu0 %v284
    %391 = vmatpush1.bf16.xpose.msra.mxu0 %v283
    %392 = vmatprep.subr.bf16.mxu0 %v286
    %393 = vmatpush1.bf16.xpose.msra.mxu0 %v285
    %394 = vmatprep.subr.bf16.mxu0 %v288
    %395 = vmatpush1.bf16.xpose.msra.mxu0 %v287
    %396 = vmatprep.subr.bf16.mxu0 %v290
    %397 = vmatpush1.bf16.xpose.msra.mxu0 %v289
    %398 = vmatprep.subr.bf16.mxu0 %v292
    %399 = vmatpush1.bf16.xpose.msra.mxu0 %v291
    %400 = vmatprep.subr.bf16.mxu0 0
    %401 = vmatpush1.bf16.xpose.msra.mxu0 0
    %402 = vmatprep.subr.bf16.mxu0 0
    %403 = vmatpush1.bf16.xpose.msra.mxu0 0
    %404 = vmatprep.subr.bf16.mxu0 0
    %405 = vmatpush1.bf16.xpose.msra.mxu0 0
    %406 = vmatprep.subr.bf16.mxu0 0
    %407 = vmatpush1.bf16.xpose.msra.mxu0 0
    %408 = vmatprep.subr.bf16.mxu0 0
    %409 = vmatpush1.bf16.xpose.msra.mxu0 0
    %410 = vmatprep.subr.bf16.mxu0 0
    %411 = vmatpush1.bf16.xpose.msra.mxu0 0
    %412 = vmatprep.subr.bf16.mxu0 0
    %413 = vmatpush1.bf16.xpose.msra.mxu0 0
    %414 = vmatprep.subr.bf16.mxu0 0
    %415 = vmatpush1.bf16.xpose.msra.mxu0 0
    %416 = vmatprep.mubr.bf16.mxu0 %v98
    %417 = vmatmul.mubr.bf16.gmra.mrb[0].mxu0 %v97
    %v418 = vpop.f32.mrb[0].mxu0
    %v419 = vadd.f32 0.0, %v418
    %v420 = vpop.f32.mrb[0].mxu0
    %v421 = vpop.f32.mrb[0].mxu0
    %v422 = vadd.f32 0.0, %v421
    %v423 = vpop.f32.mrb[0].mxu0
    %424 = vdwg.mxu0
    %425 = vst [vmem:[#allocation7] sm:$0xff] %v376
    %426 = vst [vmem:[#allocation7 + $0x8] sm:$0xff] %v378
    %427 = vst [vmem:[#allocation7 + $0x10] sm:$0xff] %v419
    %428 = vst [vmem:[#allocation7 + $0x18] sm:$0xff] %v380
    %429 = vst [vmem:[#allocation7 + $0x20] sm:$0xff] %v382
    %430 = vst [vmem:[#allocation7 + $0x28] sm:$0xff] %v422
    // Predicated region
    $region18: #{tpu_custom_call.1} parent=1 // pred_check
      _
    $region19: #{tpu_custom_call.1} parent=1 // pred_check_branch
      %432 = sbr.rel (0) target = $region21
    $region20: #{tpu_custom_call.1} parent=1 // pred_region
      %s434 = ssub.s32 768, 384
      %435 = vsyncadd [#allocation4], %s434
      %s436 = sshll.u32 [#allocation7], 4
      %s437 = int_to_ptr.vmem [resolvable:$true] %s436
      %442 = dma.vmem_to_hbm [thread:$0]  %s437, 384, %s2, [#allocation4], 384, 384, 24
    $region21: #{tpu_custom_call.1} parent=1 // pred_fallthru
      _
    // Predicated region
    $region22: #{tpu_custom_call.1} parent=1 // pred_check
      _
    $region23: #{tpu_custom_call.1} parent=1 // pred_check_branch
      %444 = sbr.rel (0) target = $region25
    $region24: #{tpu_custom_call.1} parent=1 // pred_region
      %445 = dma.done [#allocation4], 768
    $region25: #{tpu_custom_call.1} parent=1 // pred_fallthru
      _
    %446 = vsyncpa [#allocation3], 1
    %447 = vsyncpa [#allocation6], 1
    %448 = vsyncpa [#allocation4], 1

</llo_original>
